<compile_context>
chip_gen: v7x
topology: tpu7x:2x2x1
jax: 0.10.0
libtpu: 0.0.40
codegen_flags: <defaults>
</compile_context>

<pallas_src>
import jax
import jax.numpy as jnp
from jax.experimental import pallas as pl
from jax.experimental.pallas import tpu as pltpu


LANE = 128     # vreg lane width  -> lane-dense feature padding
SUBLANE = 8    # f32 sublane multiple -> batch padding / batch tile multiple


def _round_up(n, m):
    return ((n + m - 1) // m) * m


def _pad2d(a, rows, cols):
    return jnp.pad(a, ((0, rows - a.shape[0]), (0, cols - a.shape[1])))


# --------------------------- fused Pallas kernel ---------------------------- #

def _make_fused_kernel(module_order, extracted_layers, n_linear, n_outputs):
    """Builds a kernel that runs the whole sequential submodule in one pass.

    Ref layout: (x_ref, w1, b1, w2, b2, ..., out_extracted..., out_final).
    Every extracted activation is written straight from the live vreg value.
    """

    def kernel(*refs):
        x_ref = refs[0]
        param_refs = refs[1:1 + 2 * n_linear]
        out_refs = refs[1 + 2 * n_linear:]
        assert len(out_refs) == n_outputs

        x = x_ref[...].astype(jnp.float32)
        li = 0   # which linear layer we are on
        oi = 0   # which output ref we write next
        for name, kind in module_order:
            if kind == "linear":
                w = param_refs[2 * li][...].astype(jnp.float32)
                b = param_refs[2 * li + 1][...].astype(jnp.float32)  # (1, Dp)
                li += 1
                x = jnp.dot(x, w, preferred_element_type=jnp.float32) + b
            elif kind == "relu":
                x = jnp.maximum(x, 0.0)                  # fused ReLU epilogue (VPU)
            else:
                raise ValueError(f"unknown module kind {kind}")
            if name in extracted_layers:
                out_refs[oi][...] = x.astype(out_refs[oi].dtype)
                oi += 1
        out_refs[-1][...] = x.astype(out_refs[-1].dtype)  # final output

    return kernel


# ------------------------ SeqModelFeatureExtractor ------------------------- #

def init_submodule_params(key, d_in=16, d_hidden=32, d_out=8, dtype=jnp.float32):
    """Deterministic parameter init for the wrapped sequential submodule.

    Ordered child modules (mirrors an nn.Sequential / ordered _modules dict):
      fc1:   Linear(d_in, d_hidden)
      relu1: ReLU
      fc2:   Linear(d_hidden, d_hidden)
      relu2: ReLU
      fc3:   Linear(d_hidden, d_out)
    """
    ks = jax.random.split(key, 6)
    params = {
        "fc1": {
            "w": (jax.random.normal(ks[0], (d_in, d_hidden), dtype) * 0.1),
            "b": (jax.random.normal(ks[1], (d_hidden,), dtype) * 0.1),
        },
        "fc2": {
            "w": (jax.random.normal(ks[2], (d_hidden, d_hidden), dtype) * 0.1),
            "b": (jax.random.normal(ks[3], (d_hidden,), dtype) * 0.1),
        },
        "fc3": {
            "w": (jax.random.normal(ks[4], (d_hidden, d_out), dtype) * 0.1),
            "b": (jax.random.normal(ks[5], (d_out,), dtype) * 0.1),
        },
    }
    # Ordered (name, kind) list == submodule._modules.items()
    module_order = [
        ("fc1", "linear"),
        ("relu1", "relu"),
        ("fc2", "linear"),
        ("relu2", "relu"),
        ("fc3", "linear"),
    ]
    return params, module_order


def seq_model_feature_extractor(x, params, module_order, extracted_layers,
                                batch_tile=256):
    """Exact port of SeqModelFeatureExtractor.forward:

        outputs = []
        for name, module in submodule._modules.items():
            x = module(x)
            if name in extracted_layers:
                outputs += [x]
        return outputs + [x]

    but fused into a single Pallas kernel with lane-dense (128-padded)
    feature dims and a batch-tiled, megacore-parallel grid.
    """
    B, d_in = x.shape
    dtype = x.dtype

    # --- batch tiling -------------------------------------------------------
    TB = min(_round_up(batch_tile, SUBLANE), _round_up(B, SUBLANE))
    B_p = _round_up(B, TB)
    n_tiles = B_p // TB

    # --- pad activations & params to lane-dense widths (exact: zero pad) ----
    d_in_p = _round_up(d_in, LANE)
    x_p = _pad2d(x, B_p, d_in_p)

    linear_names = [n for n, k in module_order if k == "linear"]
    padded_params = []      # flat [w1_p, b1_p, w2_p, b2_p, ...]
    cur_dim, cur_dim_p = d_in, d_in_p
    layer_dims = {}         # name -> (true_out_dim, padded_out_dim) after that layer
    for name, kind in module_order:
        if kind == "linear":
            w, b = params[name]["w"], params[name]["b"]
            d_out = w.shape[1]
            d_out_p = _round_up(d_out, LANE)
            padded_params.append(_pad2d(w, cur_dim_p, d_out_p))
            padded_params.append(_pad2d(b.reshape(1, d_out), 1, d_out_p))
            cur_dim, cur_dim_p = d_out, d_out_p
        layer_dims[name] = (cur_dim, cur_dim_p)

    # --- outputs: one per extracted layer, plus the final activation --------
    out_names = [n for n, _ in module_order if n in extracted_layers]
    out_dims = [layer_dims[n] for n in out_names] + [(cur_dim, cur_dim_p)]
    n_outputs = len(out_dims)

    out_shape = tuple(
        jax.ShapeDtypeStruct((B_p, dp), dtype) for (_, dp) in out_dims)
    out_specs = tuple(
        pl.BlockSpec((TB, dp), lambda i: (i, 0)) for (_, dp) in out_dims)

    # --- input specs: x is batch-tiled; weights/biases stay VMEM-resident ---
    in_specs = [pl.BlockSpec((TB, d_in_p), lambda i: (i, 0))]
    for p in padded_params:
        in_specs.append(pl.BlockSpec(p.shape, lambda i: (0, 0)))

    kernel = _make_fused_kernel(module_order, extracted_layers,
                                n_linear=len(linear_names),
                                n_outputs=n_outputs)

    outs_p = pl.pallas_call(
        kernel,
        out_shape=out_shape,
        grid_spec=pltpu.PrefetchScalarGridSpec(
            num_scalar_prefetch=0,
            grid=(n_tiles,),
            in_specs=in_specs,
            out_specs=list(out_specs),
        ),
        compiler_params=pltpu.CompilerParams(
            dimension_semantics=("parallel",)),
    )(x_p, *padded_params)

    # slice away batch / lane padding outside the kernel
    return [o[:B, :d] for o, (d, _) in zip(outs_p, out_dims)]


# ------------------------------ reference ---------------------------------- #

def _reference(x, params, module_order, extracted_layers):
    outputs = []
    for name, kind in module_order:
        if kind == "linear":
            p = params[name]
            x = x @ p["w"] + p["b"]
        else:
            x = jnp.maximum(x, 0.0)
        if name in extracted_layers:
            outputs += [x]
    return outputs + [x]


if __name__ == "__main__":
    key = jax.random.PRNGKey(0)
    k_x, k_p = jax.random.split(key)

    B, D_IN, D_HIDDEN, D_OUT = 8, 16, 32, 8
    x = jax.random.normal(k_x, (B, D_IN), jnp.float32)

    params, module_order = init_submodule_params(k_p, D_IN, D_HIDDEN, D_OUT)
    extracted_layers = ["relu1", "relu2"]

    outs = seq_model_feature_extractor(x, params, module_order, extracted_layers)
    outs = [jax.block_until_ready(o) for o in outs]

    refs = _reference(x, params, module_order, extracted_layers)
    assert len(outs) == 3  # [relu1_out, relu2_out, final_fc3_out]
    for o, r in zip(outs, refs):
        assert o.shape == r.shape and o.dtype == r.dtype
        assert jnp.allclose(o, r, atol=1e-5, rtol=1e-5)

    print("KERNEL_OK")
</pallas_src>

<mosaic_0001>
module attributes {stable_mosaic.version = 11 : i64} {
  func.func @kernel(%arg0: i32, %arg1: memref<8x128xf32, #tpu.memory_space<vmem>>, %arg2: memref<128x128xf32, #tpu.memory_space<vmem>>, %arg3: memref<1x128xf32, #tpu.memory_space<vmem>>, %arg4: memref<128x128xf32, #tpu.memory_space<vmem>>, %arg5: memref<1x128xf32, #tpu.memory_space<vmem>>, %arg6: memref<128x128xf32, #tpu.memory_space<vmem>>, %arg7: memref<1x128xf32, #tpu.memory_space<vmem>>, %arg8: memref<8x128xf32, #tpu.memory_space<vmem>>, %arg9: memref<8x128xf32, #tpu.memory_space<vmem>>, %arg10: memref<8x128xf32, #tpu.memory_space<vmem>>) attributes {dimension_semantics = [#tpu.dimension_semantics<parallel>], iteration_bounds = array<i64: 1>, scalar_prefetch = 0 : i64, scratch_operands = 0 : i64, tpu.core_type = #tpu.core_type<tc>, window_params = [{transform_indices = @transform_0, window_bounds = array<i64: 8, 128>}, {pipeline_mode = #tpu.pipeline_mode<synchronous>, transform_indices = @transform_1, window_bounds = array<i64: 128, 128>}, {pipeline_mode = #tpu.pipeline_mode<synchronous>, transform_indices = @transform_2, window_bounds = array<i64: 1, 128>}, {pipeline_mode = #tpu.pipeline_mode<synchronous>, transform_indices = @transform_3, window_bounds = array<i64: 128, 128>}, {pipeline_mode = #tpu.pipeline_mode<synchronous>, transform_indices = @transform_4, window_bounds = array<i64: 1, 128>}, {pipeline_mode = #tpu.pipeline_mode<synchronous>, transform_indices = @transform_5, window_bounds = array<i64: 128, 128>}, {pipeline_mode = #tpu.pipeline_mode<synchronous>, transform_indices = @transform_6, window_bounds = array<i64: 1, 128>}, {transform_indices = @transform_7, window_bounds = array<i64: 8, 128>}, {transform_indices = @transform_8, window_bounds = array<i64: 8, 128>}, {transform_indices = @transform_9, window_bounds = array<i64: 8, 128>}]} {
    %c0 = arith.constant 0 : index
    %c0_0 = arith.constant 0 : index
    %0 = vector.load %arg1[%c0, %c0_0] : memref<8x128xf32, #tpu.memory_space<vmem>>, vector<8x128xf32>
    %c0_1 = arith.constant 0 : index
    %c0_2 = arith.constant 0 : index
    %1 = vector.load %arg2[%c0_1, %c0_2] : memref<128x128xf32, #tpu.memory_space<vmem>>, vector<128x128xf32>
    %c0_3 = arith.constant 0 : index
    %c0_4 = arith.constant 0 : index
    %2 = vector.load %arg3[%c0_3, %c0_4] : memref<1x128xf32, #tpu.memory_space<vmem>>, vector<1x128xf32>
    %cst = arith.constant dense<0.000000e+00> : vector<8x128xf32>
    %3 = tpu.matmul %0, %1, %cst {dimension_numbers = #tpu.dot_dimension_numbers<[1], [0], [0], [1], [0, 0, 1, 1], [], []>} : vector<8x128xf32>, vector<128x128xf32>, vector<8x128xf32> -> vector<8x128xf32>
    %4 = vector.broadcast %2 : vector<1x128xf32> to vector<8x128xf32>
    %5 = arith.addf %3, %4 : vector<8x128xf32>
    %cst_5 = arith.constant 0.000000e+00 : f32
    %6 = vector.broadcast %cst_5 : f32 to vector<8x128xf32>
    %7 = arith.maximumf %5, %6 : vector<8x128xf32>
    %c0_6 = arith.constant 0 : index
    %c0_7 = arith.constant 0 : index
    %8 = vector.load %arg8[%c0_6, %c0_7] : memref<8x128xf32, #tpu.memory_space<vmem>>, vector<8x128xf32>
    tpu.vector_store %arg8[%c0_6, %c0_7], %7 {strides = array<i32>} : memref<8x128xf32, #tpu.memory_space<vmem>>, vector<8x128xf32>,
    %c0_8 = arith.constant 0 : index
    %c0_9 = arith.constant 0 : index
    %9 = vector.load %arg4[%c0_8, %c0_9] : memref<128x128xf32, #tpu.memory_space<vmem>>, vector<128x128xf32>
    %c0_10 = arith.constant 0 : index
    %c0_11 = arith.constant 0 : index
    %10 = vector.load %arg5[%c0_10, %c0_11] : memref<1x128xf32, #tpu.memory_space<vmem>>, vector<1x128xf32>
    %cst_12 = arith.constant dense<0.000000e+00> : vector<8x128xf32>
    %11 = tpu.matmul %7, %9, %cst_12 {dimension_numbers = #tpu.dot_dimension_numbers<[1], [0], [0], [1], [0, 0, 1, 1], [], []>} : vector<8x128xf32>, vector<128x128xf32>, vector<8x128xf32> -> vector<8x128xf32>
    %12 = vector.broadcast %10 : vector<1x128xf32> to vector<8x128xf32>
    %13 = arith.addf %11, %12 : vector<8x128xf32>
    %cst_13 = arith.constant 0.000000e+00 : f32
    %14 = vector.broadcast %cst_13 : f32 to vector<8x128xf32>
    %15 = arith.maximumf %13, %14 : vector<8x128xf32>
    %c0_14 = arith.constant 0 : index
    %c0_15 = arith.constant 0 : index
    %16 = vector.load %arg9[%c0_14, %c0_15] : memref<8x128xf32, #tpu.memory_space<vmem>>, vector<8x128xf32>
    tpu.vector_store %arg9[%c0_14, %c0_15], %15 {strides = array<i32>} : memref<8x128xf32, #tpu.memory_space<vmem>>, vector<8x128xf32>,
    %c0_16 = arith.constant 0 : index
    %c0_17 = arith.constant 0 : index
    %17 = vector.load %arg6[%c0_16, %c0_17] : memref<128x128xf32, #tpu.memory_space<vmem>>, vector<128x128xf32>
    %c0_18 = arith.constant 0 : index
    %c0_19 = arith.constant 0 : index
    %18 = vector.load %arg7[%c0_18, %c0_19] : memref<1x128xf32, #tpu.memory_space<vmem>>, vector<1x128xf32>
    %cst_20 = arith.constant dense<0.000000e+00> : vector<8x128xf32>
    %19 = tpu.matmul %15, %17, %cst_20 {dimension_numbers = #tpu.dot_dimension_numbers<[1], [0], [0], [1], [0, 0, 1, 1], [], []>} : vector<8x128xf32>, vector<128x128xf32>, vector<8x128xf32> -> vector<8x128xf32>
    %20 = vector.broadcast %18 : vector<1x128xf32> to vector<8x128xf32>
    %21 = arith.addf %19, %20 : vector<8x128xf32>
    %c0_21 = arith.constant 0 : index
    %c0_22 = arith.constant 0 : index
    %22 = vector.load %arg10[%c0_21, %c0_22] : memref<8x128xf32, #tpu.memory_space<vmem>>, vector<8x128xf32>
    tpu.vector_store %arg10[%c0_21, %c0_22], %21 {strides = array<i32>} : memref<8x128xf32, #tpu.memory_space<vmem>>, vector<8x128xf32>,
    return
  }
  func.func @transform_0(%arg0: i32) -> (i32, i32) {
    %c0_i32 = arith.constant 0 : i32
    %c0_i32_0 = arith.constant 0 : i32
    return %arg0, %c0_i32 : i32, i32
  }
  func.func @transform_1(%arg0: i32) -> (i32, i32) {
    %c0_i32 = arith.constant 0 : i32
    %c0_i32_0 = arith.constant 0 : i32
    %c0_i32_1 = arith.constant 0 : i32
    return %c0_i32, %c0_i32_0 : i32, i32
  }
  func.func @transform_2(%arg0: i32) -> (i32, i32) {
    %c0_i32 = arith.constant 0 : i32
    %c0_i32_0 = arith.constant 0 : i32
    %c0_i32_1 = arith.constant 0 : i32
    return %c0_i32, %c0_i32_0 : i32, i32
  }
  func.func @transform_3(%arg0: i32) -> (i32, i32) {
    %c0_i32 = arith.constant 0 : i32
    %c0_i32_0 = arith.constant 0 : i32
    %c0_i32_1 = arith.constant 0 : i32
    return %c0_i32, %c0_i32_0 : i32, i32
  }
  func.func @transform_4(%arg0: i32) -> (i32, i32) {
    %c0_i32 = arith.constant 0 : i32
    %c0_i32_0 = arith.constant 0 : i32
    %c0_i32_1 = arith.constant 0 : i32
    return %c0_i32, %c0_i32_0 : i32, i32
  }
  func.func @transform_5(%arg0: i32) -> (i32, i32) {
    %c0_i32 = arith.constant 0 : i32
    %c0_i32_0 = arith.constant 0 : i32
    %c0_i32_1 = arith.constant 0 : i32
    return %c0_i32, %c0_i32_0 : i32, i32
  }
  func.func @transform_6(%arg0: i32) -> (i32, i32) {
    %c0_i32 = arith.constant 0 : i32
    %c0_i32_0 = arith.constant 0 : i32
    %c0_i32_1 = arith.constant 0 : i32
    return %c0_i32, %c0_i32_0 : i32, i32
  }
  func.func @transform_7(%arg0: i32) -> (i32, i32) {
    %c0_i32 = arith.constant 0 : i32
    %c0_i32_0 = arith.constant 0 : i32
    return %arg0, %c0_i32 : i32, i32
  }
  func.func @transform_8(%arg0: i32) -> (i32, i32) {
    %c0_i32 = arith.constant 0 : i32
    %c0_i32_0 = arith.constant 0 : i32
    return %arg0, %c0_i32 : i32, i32
  }
  func.func @transform_9(%arg0: i32) -> (i32, i32) {
    %c0_i32 = arith.constant 0 : i32
    %c0_i32_0 = arith.constant 0 : i32
    return %arg0, %c0_i32 : i32, i32
  }
}

</mosaic_0001>

<llo_original>
// kernel: tpu_custom_call.1
$region0: #{tpu_custom_call.1}
  #allocation0 [shape = 'u32[]', space=smem, size = 0x4, offset = 0x4, fixed_abs, tag = 'smem constant byte address 0x4 - core index']
  #allocation1 [shape = 'u32[144,128]{1,0:T(1,128)}', space=vmem, size = 0x12000, scoped, tag = 'internal scratch']
  %s0 = inlined_call_operand.hbm [shape: f32[8,128], index: 0, kind: input, shape index: {}]
  %s1 = inlined_call_operand.hbm [shape: f32[128,128], index: 1, kind: input, shape index: {}]
  %s2 = inlined_call_operand.vmem [shape: f32[1,128], index: 2, kind: input, shape index: {}]
  %s3 = inlined_call_operand.hbm [shape: f32[128,128], index: 3, kind: input, shape index: {}]
  %s4 = inlined_call_operand.vmem [shape: f32[1,128], index: 4, kind: input, shape index: {}]
  %s5 = inlined_call_operand.hbm [shape: f32[128,128], index: 5, kind: input, shape index: {}]
  %s6 = inlined_call_operand.vmem [shape: f32[1,128], index: 6, kind: input, shape index: {}]
  %s7 = inlined_call_operand.hbm [shape: f32[8,128], index: 7, kind: output, shape index: {0}]
  %s8 = inlined_call_operand.hbm [shape: f32[8,128], index: 8, kind: output, shape index: {1}]
  %s9 = inlined_call_operand.hbm [shape: f32[8,128], index: 9, kind: output, shape index: {2}]
  %10 = xla_tuple %s7, %s8, %s9
  %s11 = sld [smem:[#allocation0]]
  $region70: #{tpu_custom_call.1} parent=0
    _
  %s13 = ssub.s32 1, %s11
  %s14 = scalar_select 0, %s13, %s11
  $region1: #{tpu_custom_call.1} parent=0
    #allocation2 [shape = 'u8[4096]{0}', space=vmem, size = 0x1000, scoped, tag = 'input window, operand 0, single buffered']
    #allocation3 [shape = 's32[1]{0}', space=sflag, size = 0x4, scoped, tag = 'scoped memory for tpu_custom_call.1']
    #allocation4 [shape = 's32[1]{0}', space=sflag, size = 0x4, scoped, tag = 'scoped memory for tpu_custom_call.1']
    #allocation5 [shape = 'u8[65536]{0}', space=vmem, size = 0x10000, scoped, tag = 'input window, operand 1, single buffered']
    #allocation6 [shape = 's32[1]{0}', space=sflag, size = 0x4, scoped, tag = 'scoped memory for tpu_custom_call.1']
    #allocation7 [shape = 'u8[65536]{0}', space=vmem, size = 0x10000, scoped, tag = 'input window, operand 3, single buffered']
    #allocation8 [shape = 'u8[65536]{0}', space=vmem, size = 0x10000, scoped, tag = 'input window, operand 5, single buffered']
    #allocation9 [shape = 's32[1]{0}', space=sflag, size = 0x4, scoped, tag = 'scoped memory for tpu_custom_call.1']
    #allocation10 [shape = 'u8[4096]{0}', space=vmem, size = 0x1000, scoped, tag = 'output window, operand 0, single buffered']
    #allocation11 [shape = 'u8[4096]{0}', space=vmem, size = 0x1000, scoped, tag = 'output window, operand 1, single buffered']
    #allocation12 [shape = 's32[1]{0}', space=sflag, size = 0x4, scoped, tag = 'scoped memory for tpu_custom_call.1']
    #allocation13 [shape = 'u8[4096]{0}', space=vmem, size = 0x1000, scoped, tag = 'output window, operand 2, single buffered']
    %15 = vsyncpa [#allocation3], 0
    %16 = vsyncpa [#allocation6], 0
    %17 = vsyncpa [#allocation9], 0
    %18 = vsyncpa [#allocation4], 0
    %19 = vsyncpa [#allocation12], 0
    // Predicated region
    $region2: #{tpu_custom_call.1} parent=1 // pred_check
      _
    $region3: #{tpu_custom_call.1} parent=1 // pred_check_branch
      %21 = sbr.rel (0) target = $region5
    $region4: #{tpu_custom_call.1} parent=1 // pred_region
      %s23 = ssub.s32 128, 128
      %24 = vsyncadd [#allocation3], %s23
      %s26 = sshll.u32 [#allocation2], 4
      %s27 = int_to_ptr.vmem [resolvable:$true] %s26
      %29 = dma.hbm_to_vmem [thread:$0]  %s0, 128, %s27, [#allocation3]
    $region5: #{tpu_custom_call.1} parent=1 // pred_fallthru
      _
    // Predicated region
    $region6: #{tpu_custom_call.1} parent=1 // pred_check
      _
    $region7: #{tpu_custom_call.1} parent=1 // pred_check_branch
      %31 = sbr.rel (0) target = $region9
    $region8: #{tpu_custom_call.1} parent=1 // pred_region
      %s33 = ssub.s32 2048, 2048
      %34 = vsyncadd [#allocation6], %s33
      %s35 = sshll.u32 [#allocation5], 4
      %s36 = int_to_ptr.vmem [resolvable:$true] %s35
      %41 = dma.hbm_to_vmem [thread:$0]  %s1, 2048, %s36, [#allocation6], 128, 128, 8
    $region9: #{tpu_custom_call.1} parent=1 // pred_fallthru
      _
    // Predicated region
    $region10: #{tpu_custom_call.1} parent=1 // pred_check
      _
    $region11: #{tpu_custom_call.1} parent=1 // pred_check_branch
      %43 = sbr.rel (0) target = $region13
    $region12: #{tpu_custom_call.1} parent=1 // pred_region
      _
    $region13: #{tpu_custom_call.1} parent=1 // pred_fallthru
      _
    // Predicated region
    $region14: #{tpu_custom_call.1} parent=1 // pred_check
      _
    $region15: #{tpu_custom_call.1} parent=1 // pred_check_branch
      %45 = sbr.rel (0) target = $region17
    $region16: #{tpu_custom_call.1} parent=1 // pred_region
      %s47 = ssub.s32 2048, 2048
      %48 = vsyncadd [#allocation6], %s47
      %s49 = sshll.u32 [#allocation7], 4
      %s50 = int_to_ptr.vmem [resolvable:$true] %s49
      %55 = dma.hbm_to_vmem [thread:$0]  %s3, 2048, %s50, [#allocation6], 128, 128, 8
    $region17: #{tpu_custom_call.1} parent=1 // pred_fallthru
      _
    // Predicated region
    $region18: #{tpu_custom_call.1} parent=1 // pred_check
      _
    $region19: #{tpu_custom_call.1} parent=1 // pred_check_branch
      %57 = sbr.rel (0) target = $region21
    $region20: #{tpu_custom_call.1} parent=1 // pred_region
      _
    $region21: #{tpu_custom_call.1} parent=1 // pred_fallthru
      _
    // Predicated region
    $region22: #{tpu_custom_call.1} parent=1 // pred_check
      _
    $region23: #{tpu_custom_call.1} parent=1 // pred_check_branch
      %59 = sbr.rel (0) target = $region25
    $region24: #{tpu_custom_call.1} parent=1 // pred_region
      %s61 = ssub.s32 2048, 2048
      %62 = vsyncadd [#allocation9], %s61
      %s63 = sshll.u32 [#allocation8], 4
      %s64 = int_to_ptr.vmem [resolvable:$true] %s63
      %69 = dma.hbm_to_vmem [thread:$0]  %s5, 2048, %s64, [#allocation9], 128, 128, 8
    $region25: #{tpu_custom_call.1} parent=1 // pred_fallthru
      _
    // Predicated region
    $region26: #{tpu_custom_call.1} parent=1 // pred_check
      _
    $region27: #{tpu_custom_call.1} parent=1 // pred_check_branch
      %71 = sbr.rel (0) target = $region29
    $region28: #{tpu_custom_call.1} parent=1 // pred_region
      _
    $region29: #{tpu_custom_call.1} parent=1 // pred_fallthru
      _
    // Predicated region
    $region30: #{tpu_custom_call.1} parent=1 // pred_check
      _
    $region31: #{tpu_custom_call.1} parent=1 // pred_check_branch
      %73 = sbr.rel (0) target = $region33
    $region32: #{tpu_custom_call.1} parent=1 // pred_region
      %74 = dma.done [#allocation3], 128
    $region33: #{tpu_custom_call.1} parent=1 // pred_fallthru
      _
    // Predicated region
    $region34: #{tpu_custom_call.1} parent=1 // pred_check
      _
    $region35: #{tpu_custom_call.1} parent=1 // pred_check_branch
      %76 = sbr.rel (0) target = $region37
    $region36: #{tpu_custom_call.1} parent=1 // pred_region
      %77 = dma.done [#allocation6], 2048
    $region37: #{tpu_custom_call.1} parent=1 // pred_fallthru
      _
    // Predicated region
    $region38: #{tpu_custom_call.1} parent=1 // pred_check
      _
    $region39: #{tpu_custom_call.1} parent=1 // pred_check_branch
      %79 = sbr.rel (0) target = $region41
    $region40: #{tpu_custom_call.1} parent=1 // pred_region
      %80 = dma.done [#allocation6], 2048
    $region41: #{tpu_custom_call.1} parent=1 // pred_fallthru
      _
    // Predicated region
    $region42: #{tpu_custom_call.1} parent=1 // pred_check
      _
    $region43: #{tpu_custom_call.1} parent=1 // pred_check_branch
      %82 = sbr.rel (0) target = $region45
    $region44: #{tpu_custom_call.1} parent=1 // pred_region
      %83 = dma.done [#allocation9], 2048
    $region45: #{tpu_custom_call.1} parent=1 // pred_fallthru
      _
    %v84 = vld [vmem:[#allocation2] sm:$0xff]
    %v85 = vld [vmem:[#allocation5] sm:$0xff]
    %v86 = vld [vmem:[#allocation5 + $0x8] sm:$0xff]
    %v87 = vld [vmem:[#allocation5 + $0x10] sm:$0xff]
    %v88 = vld [vmem:[#allocation5 + $0x18] sm:$0xff]
    %v89 = vld [vmem:[#allocation5 + $0x20] sm:$0xff]
    %v90 = vld [vmem:[#allocation5 + $0x28] sm:$0xff]
    %v91 = vld [vmem:[#allocation5 + $0x30] sm:$0xff]
    %v92 = vld [vmem:[#allocation5 + $0x38] sm:$0xff]
    %v93 = vld [vmem:[#allocation5 + $0x40] sm:$0xff]
    %v94 = vld [vmem:[#allocation5 + $0x48] sm:$0xff]
    %v95 = vld [vmem:[#allocation5 + $0x50] sm:$0xff]
    %v96 = vld [vmem:[#allocation5 + $0x58] sm:$0xff]
    %v97 = vld [vmem:[#allocation5 + $0x60] sm:$0xff]
    %v98 = vld [vmem:[#allocation5 + $0x68] sm:$0xff]
    %v99 = vld [vmem:[#allocation5 + $0x70] sm:$0xff]
    %v100 = vld [vmem:[#allocation5 + $0x78] sm:$0xff]
    %v101 = vld [vmem:[%s2] sm:$0x1]
    %v103 = vlaneseq
    %v104 = vshrl.u32 %v103, 7
    %v105 = vsub.s32 0, %v104
    %v106 = vrot.slane %v101, %v105
    %108 = vmatprep.subr.mxu0 0.0
    %109 = vmatpush1.msra.mxu0 %v85
    %110 = vmatprep.subr.mxu0 0.0
    %111 = vmatpush1.msra.mxu0 %v86
    %112 = vmatprep.subr.mxu0 0.0
    %113 = vmatpush1.msra.mxu0 %v87
    %114 = vmatprep.subr.mxu0 0.0
    %115 = vmatpush1.msra.mxu0 %v88
    %116 = vmatprep.subr.mxu0 0.0
    %117 = vmatpush1.msra.mxu0 %v89
    %118 = vmatprep.subr.mxu0 0.0
    %119 = vmatpush1.msra.mxu0 %v90
    %120 = vmatprep.subr.mxu0 0.0
    %121 = vmatpush1.msra.mxu0 %v91
    %122 = vmatprep.subr.mxu0 0.0
    %123 = vmatpush1.msra.mxu0 %v92
    %124 = vmatprep.subr.mxu0 0.0
    %125 = vmatpush1.msra.mxu0 %v93
    %126 = vmatprep.subr.mxu0 0.0
    %127 = vmatpush1.msra.mxu0 %v94
    %128 = vmatprep.subr.mxu0 0.0
    %129 = vmatpush1.msra.mxu0 %v95
    %130 = vmatprep.subr.mxu0 0.0
    %131 = vmatpush1.msra.mxu0 %v96
    %132 = vmatprep.subr.mxu0 0.0
    %133 = vmatpush1.msra.mxu0 %v97
    %134 = vmatprep.subr.mxu0 0.0
    %135 = vmatpush1.msra.mxu0 %v98
    %136 = vmatprep.subr.mxu0 0.0
    %137 = vmatpush1.msra.mxu0 %v99
    %138 = vmatprep.subr.mxu0 0.0
    %139 = vmatpush1.msra.mxu0 %v100
    %140 = vmatprep.subr.mxu0 0.0
    %141 = vmatpush1.msra.mxu0 0.0
    %142 = vmatprep.subr.mxu0 0.0
    %143 = vmatpush1.msra.mxu0 0.0
    %144 = vmatprep.subr.mxu0 0.0
    %145 = vmatpush1.msra.mxu0 0.0
    %146 = vmatprep.subr.mxu0 0.0
    %147 = vmatpush1.msra.mxu0 0.0
    %148 = vmatprep.subr.mxu0 0.0
    %149 = vmatpush1.msra.mxu0 0.0
    %150 = vmatprep.subr.mxu0 0.0
    %151 = vmatpush1.msra.mxu0 0.0
    %152 = vmatprep.subr.mxu0 0.0
    %153 = vmatpush1.msra.mxu0 0.0
    %154 = vmatprep.subr.mxu0 0.0
    %155 = vmatpush1.msra.mxu0 0.0
    %156 = vmatprep.subr.mxu0 0.0
    %157 = vmatpush1.msra.mxu0 0.0
    %158 = vmatprep.subr.mxu0 0.0
    %159 = vmatpush1.msra.mxu0 0.0
    %160 = vmatprep.subr.mxu0 0.0
    %161 = vmatpush1.msra.mxu0 0.0
    %162 = vmatprep.subr.mxu0 0.0
    %163 = vmatpush1.msra.mxu0 0.0
    %164 = vmatprep.subr.mxu0 0.0
    %165 = vmatpush1.msra.mxu0 0.0
    %166 = vmatprep.subr.mxu0 0.0
    %167 = vmatpush1.msra.mxu0 0.0
    %168 = vmatprep.subr.mxu0 0.0
    %169 = vmatpush1.msra.mxu0 0.0
    %170 = vmatprep.subr.mxu0 0.0
    %171 = vmatpush1.msra.mxu0 0.0
    %172 = vmatprep.mubr.f32.mxu0 0.0
    %173 = vmatmul.mubr.f32.gmra.mrb[0].mxu0 %v84
    %v174 = vpop.f32.mrb[0].mxu0
    %v175 = vadd.f32 %v106, %v174
    %v176 = vpop.f32.mrb[0].mxu0
    %177 = vdwg.mxu0
    %v178 = vmax.f32 %v175, 0.0
    %179 = vst [vmem:[#allocation10] sm:$0xff] %v178
    %v180 = vld [vmem:[#allocation7] sm:$0xff]
    %v181 = vld [vmem:[#allocation7 + $0x8] sm:$0xff]
    %v182 = vld [vmem:[#allocation7 + $0x10] sm:$0xff]
    %v183 = vld [vmem:[#allocation7 + $0x18] sm:$0xff]
    %v184 = vld [vmem:[#allocation7 + $0x20] sm:$0xff]
    %v185 = vld [vmem:[#allocation7 + $0x28] sm:$0xff]
    %v186 = vld [vmem:[#allocation7 + $0x30] sm:$0xff]
    %v187 = vld [vmem:[#allocation7 + $0x38] sm:$0xff]
    %v188 = vld [vmem:[#allocation7 + $0x40] sm:$0xff]
    %v189 = vld [vmem:[#allocation7 + $0x48] sm:$0xff]
    %v190 = vld [vmem:[#allocation7 + $0x50] sm:$0xff]
    %v191 = vld [vmem:[#allocation7 + $0x58] sm:$0xff]
    %v192 = vld [vmem:[#allocation7 + $0x60] sm:$0xff]
    %v193 = vld [vmem:[#allocation7 + $0x68] sm:$0xff]
    %v194 = vld [vmem:[#allocation7 + $0x70] sm:$0xff]
    %v195 = vld [vmem:[#allocation7 + $0x78] sm:$0xff]
    %v196 = vld [vmem:[%s4] sm:$0x1]
    %v198 = vlaneseq
    %v199 = vshrl.u32 %v198, 7
    %v200 = vsub.s32 0, %v199
    %v201 = vrot.slane %v196, %v200
    %203 = vmatprep.subr.mxu0 0.0
    %204 = vmatpush1.msra.mxu0 %v180
    %205 = vmatprep.subr.mxu0 0.0
    %206 = vmatpush1.msra.mxu0 %v181
    %207 = vmatprep.subr.mxu0 0.0
    %208 = vmatpush1.msra.mxu0 %v182
    %209 = vmatprep.subr.mxu0 0.0
    %210 = vmatpush1.msra.mxu0 %v183
    %211 = vmatprep.subr.mxu0 0.0
    %212 = vmatpush1.msra.mxu0 %v184
    %213 = vmatprep.subr.mxu0 0.0
    %214 = vmatpush1.msra.mxu0 %v185
    %215 = vmatprep.subr.mxu0 0.0
    %216 = vmatpush1.msra.mxu0 %v186
    %217 = vmatprep.subr.mxu0 0.0
    %218 = vmatpush1.msra.mxu0 %v187
    %219 = vmatprep.subr.mxu0 0.0
    %220 = vmatpush1.msra.mxu0 %v188
    %221 = vmatprep.subr.mxu0 0.0
    %222 = vmatpush1.msra.mxu0 %v189
    %223 = vmatprep.subr.mxu0 0.0
    %224 = vmatpush1.msra.mxu0 %v190
    %225 = vmatprep.subr.mxu0 0.0
    %226 = vmatpush1.msra.mxu0 %v191
    %227 = vmatprep.subr.mxu0 0.0
    %228 = vmatpush1.msra.mxu0 %v192
    %229 = vmatprep.subr.mxu0 0.0
    %230 = vmatpush1.msra.mxu0 %v193
    %231 = vmatprep.subr.mxu0 0.0
    %232 = vmatpush1.msra.mxu0 %v194
    %233 = vmatprep.subr.mxu0 0.0
    %234 = vmatpush1.msra.mxu0 %v195
    %235 = vmatprep.subr.mxu0 0.0
    %236 = vmatpush1.msra.mxu0 0.0
    %237 = vmatprep.subr.mxu0 0.0
    %238 = vmatpush1.msra.mxu0 0.0
    %239 = vmatprep.subr.mxu0 0.0
    %240 = vmatpush1.msra.mxu0 0.0
    %241 = vmatprep.subr.mxu0 0.0
    %242 = vmatpush1.msra.mxu0 0.0
    %243 = vmatprep.subr.mxu0 0.0
    %244 = vmatpush1.msra.mxu0 0.0
    %245 = vmatprep.subr.mxu0 0.0
    %246 = vmatpush1.msra.mxu0 0.0
    %247 = vmatprep.subr.mxu0 0.0
    %248 = vmatpush1.msra.mxu0 0.0
    %249 = vmatprep.subr.mxu0 0.0
    %250 = vmatpush1.msra.mxu0 0.0
    %251 = vmatprep.subr.mxu0 0.0
    %252 = vmatpush1.msra.mxu0 0.0
    %253 = vmatprep.subr.mxu0 0.0
    %254 = vmatpush1.msra.mxu0 0.0
    %255 = vmatprep.subr.mxu0 0.0
    %256 = vmatpush1.msra.mxu0 0.0
    %257 = vmatprep.subr.mxu0 0.0
    %258 = vmatpush1.msra.mxu0 0.0
    %259 = vmatprep.subr.mxu0 0.0
    %260 = vmatpush1.msra.mxu0 0.0
    %261 = vmatprep.subr.mxu0 0.0
    %262 = vmatpush1.msra.mxu0 0.0
    %263 = vmatprep.subr.mxu0 0.0
    %264 = vmatpush1.msra.mxu0 0.0
    %265 = vmatprep.subr.mxu0 0.0
    %266 = vmatpush1.msra.mxu0 0.0
    %267 = vmatprep.mubr.f32.mxu0 0.0
    %268 = vmatmul.mubr.f32.gmra.mrb[0].mxu0 %v178
    %v269 = vpop.f32.mrb[0].mxu0
    %v270 = vadd.f32 %v201, %v269
    %v271 = vpop.f32.mrb[0].mxu0
    %272 = vdwg.mxu0
    %v273 = vmax.f32 %v270, 0.0
    %274 = vst [vmem:[#allocation11] sm:$0xff] %v273
    %v275 = vld [vmem:[#allocation8] sm:$0xff]
    %v276 = vld [vmem:[#allocation8 + $0x8] sm:$0xff]
    %v277 = vld [vmem:[#allocation8 + $0x10] sm:$0xff]
    %v278 = vld [vmem:[#allocation8 + $0x18] sm:$0xff]
    %v279 = vld [vmem:[#allocation8 + $0x20] sm:$0xff]
    %v280 = vld [vmem:[#allocation8 + $0x28] sm:$0xff]
    %v281 = vld [vmem:[#allocation8 + $0x30] sm:$0xff]
    %v282 = vld [vmem:[#allocation8 + $0x38] sm:$0xff]
    %v283 = vld [vmem:[#allocation8 + $0x40] sm:$0xff]
    %v284 = vld [vmem:[#allocation8 + $0x48] sm:$0xff]
    %v285 = vld [vmem:[#allocation8 + $0x50] sm:$0xff]
    %v286 = vld [vmem:[#allocation8 + $0x58] sm:$0xff]
    %v287 = vld [vmem:[#allocation8 + $0x60] sm:$0xff]
    %v288 = vld [vmem:[#allocation8 + $0x68] sm:$0xff]
    %v289 = vld [vmem:[#allocation8 + $0x70] sm:$0xff]
    %v290 = vld [vmem:[#allocation8 + $0x78] sm:$0xff]
    %v291 = vld [vmem:[%s6] sm:$0x1]
    %v293 = vlaneseq
    %v294 = vshrl.u32 %v293, 7
    %v295 = vsub.s32 0, %v294
    %v296 = vrot.slane %v291, %v295
    %298 = vmatprep.subr.mxu0 0.0
    %299 = vmatpush1.msra.mxu0 %v275
    %300 = vmatprep.subr.mxu0 0.0
    %301 = vmatpush1.msra.mxu0 %v276
    %302 = vmatprep.subr.mxu0 0.0
    %303 = vmatpush1.msra.mxu0 %v277
    %304 = vmatprep.subr.mxu0 0.0
    %305 = vmatpush1.msra.mxu0 %v278
    %306 = vmatprep.subr.mxu0 0.0
    %307 = vmatpush1.msra.mxu0 %v279
    %308 = vmatprep.subr.mxu0 0.0
    %309 = vmatpush1.msra.mxu0 %v280
    %310 = vmatprep.subr.mxu0 0.0
    %311 = vmatpush1.msra.mxu0 %v281
    %312 = vmatprep.subr.mxu0 0.0
    %313 = vmatpush1.msra.mxu0 %v282
    %314 = vmatprep.subr.mxu0 0.0
    %315 = vmatpush1.msra.mxu0 %v283
    %316 = vmatprep.subr.mxu0 0.0
    %317 = vmatpush1.msra.mxu0 %v284
    %318 = vmatprep.subr.mxu0 0.0
    %319 = vmatpush1.msra.mxu0 %v285
    %320 = vmatprep.subr.mxu0 0.0
    %321 = vmatpush1.msra.mxu0 %v286
    %322 = vmatprep.subr.mxu0 0.0
    %323 = vmatpush1.msra.mxu0 %v287
    %324 = vmatprep.subr.mxu0 0.0
    %325 = vmatpush1.msra.mxu0 %v288
    %326 = vmatprep.subr.mxu0 0.0
    %327 = vmatpush1.msra.mxu0 %v289
    %328 = vmatprep.subr.mxu0 0.0
    %329 = vmatpush1.msra.mxu0 %v290
    %330 = vmatprep.subr.mxu0 0.0
    %331 = vmatpush1.msra.mxu0 0.0
    %332 = vmatprep.subr.mxu0 0.0
    %333 = vmatpush1.msra.mxu0 0.0
    %334 = vmatprep.subr.mxu0 0.0
    %335 = vmatpush1.msra.mxu0 0.0
    %336 = vmatprep.subr.mxu0 0.0
    %337 = vmatpush1.msra.mxu0 0.0
    %338 = vmatprep.subr.mxu0 0.0
    %339 = vmatpush1.msra.mxu0 0.0
    %340 = vmatprep.subr.mxu0 0.0
    %341 = vmatpush1.msra.mxu0 0.0
    %342 = vmatprep.subr.mxu0 0.0
    %343 = vmatpush1.msra.mxu0 0.0
    %344 = vmatprep.subr.mxu0 0.0
    %345 = vmatpush1.msra.mxu0 0.0
    %346 = vmatprep.subr.mxu0 0.0
    %347 = vmatpush1.msra.mxu0 0.0
    %348 = vmatprep.subr.mxu0 0.0
    %349 = vmatpush1.msra.mxu0 0.0
    %350 = vmatprep.subr.mxu0 0.0
    %351 = vmatpush1.msra.mxu0 0.0
    %352 = vmatprep.subr.mxu0 0.0
    %353 = vmatpush1.msra.mxu0 0.0
    %354 = vmatprep.subr.mxu0 0.0
    %355 = vmatpush1.msra.mxu0 0.0
    %356 = vmatprep.subr.mxu0 0.0
    %357 = vmatpush1.msra.mxu0 0.0
    %358 = vmatprep.subr.mxu0 0.0
    %359 = vmatpush1.msra.mxu0 0.0
    %360 = vmatprep.subr.mxu0 0.0
    %361 = vmatpush1.msra.mxu0 0.0
    %362 = vmatprep.mubr.f32.mxu0 0.0
    %363 = vmatmul.mubr.f32.gmra.mrb[0].mxu0 %v273
    %v364 = vpop.f32.mrb[0].mxu0
    %v365 = vadd.f32 %v296, %v364
    %v366 = vpop.f32.mrb[0].mxu0
    %367 = vdwg.mxu0
    %368 = vst [vmem:[#allocation13] sm:$0xff] %v365
    // Predicated region
    $region46: #{tpu_custom_call.1} parent=1 // pred_check
      _
    $region47: #{tpu_custom_call.1} parent=1 // pred_check_branch
      %370 = sbr.rel (0) target = $region49
    $region48: #{tpu_custom_call.1} parent=1 // pred_region
      %s372 = ssub.s32 128, 128
      %373 = vsyncadd [#allocation4], %s372
      %s375 = sshll.u32 [#allocation10], 4
      %s376 = int_to_ptr.vmem [resolvable:$true] %s375
      %378 = dma.vmem_to_hbm [thread:$0]  %s376, 128, %s7, [#allocation4]
    $region49: #{tpu_custom_call.1} parent=1 // pred_fallthru
      _
    // Predicated region
    $region50: #{tpu_custom_call.1} parent=1 // pred_check
      _
    $region51: #{tpu_custom_call.1} parent=1 // pred_check_branch
      %380 = sbr.rel (0) target = $region53
    $region52: #{tpu_custom_call.1} parent=1 // pred_region
      %s382 = ssub.s32 128, 128
      %383 = vsyncadd [#allocation12], %s382
      %s385 = sshll.u32 [#allocation11], 4
      %s386 = int_to_ptr.vmem [resolvable:$true] %s385
      %388 = dma.vmem_to_hbm [thread:$0]  %s386, 128, %s8, [#allocation12]
    $region53: #{tpu_custom_call.1} parent=1 // pred_fallthru
      _
    // Predicated region
    $region54: #{tpu_custom_call.1} parent=1 // pred_check
      _
    $region55: #{tpu_custom_call.1} parent=1 // pred_check_branch
      %390 = sbr.rel (0) target = $region57
    $region56: #{tpu_custom_call.1} parent=1 // pred_region
      %s392 = ssub.s32 128, 128
      %393 = vsyncadd [#allocation12], %s392
      %s395 = sshll.u32 [#allocation13], 4
      %s396 = int_to_ptr.vmem [resolvable:$true] %s395
      %398 = dma.vmem_to_hbm [thread:$0]  %s396, 128, %s9, [#allocation12]
    $region57: #{tpu_custom_call.1} parent=1 // pred_fallthru
      _
    // Predicated region
    $region58: #{tpu_custom_call.1} parent=1 // pred_check
      _
    $region59: #{tpu_custom_call.1} parent=1 // pred_check_branch
      %400 = sbr.rel (0) target = $region61
    $region60: #{tpu_custom_call.1} parent=1 // pred_region
      %401 = dma.done [#allocation4], 128
    $region61: #{tpu_custom_call.1} parent=1 // pred_fallthru
      _
    // Predicated region
    $region62: #{tpu_custom_call.1} parent=1 // pred_check
      _
    $region63: #{tpu_custom_call.1} parent=1 // pred_check_branch
      %403 = sbr.rel (0) target = $region65
    $region64: #{tpu_custom_call.1} parent=1 // pred_region
      %404 = dma.done [#allocation12], 128
    $region65: #{tpu_custom_call.1} parent=1 // pred_fallthru
      _
    // Predicated region
    $region66: #{tpu_custom_call.1} parent=1 // pred_check
      _
    $region67: #{tpu_custom_call.1} parent=1 // pred_check_branch
      %406 = sbr.rel (0) target = $region69
    $region68: #{tpu_custom_call.1} parent=1 // pred_region
      %407 = dma.done [#allocation12], 128
    $region69: #{tpu_custom_call.1} parent=1 // pred_fallthru
      _
    %408 = vsyncpa [#allocation3], 1
    %409 = vsyncpa [#allocation6], 1
    %410 = vsyncpa [#allocation9], 1
    %411 = vsyncpa [#allocation4], 1
    %412 = vsyncpa [#allocation12], 1

</llo_original>
